<compile_context>
chip_gen: v6e
topology: v6e:2x2x1
jax: 0.10.0
libtpu: 0.0.40
codegen_flags: <defaults>
</compile_context>

<pallas_src>
import math

import numpy as np
import jax
import jax.numpy as jnp
from jax.experimental import pallas as pl
from jax.experimental.pallas import tpu as pltpu

_SUBLANE = 8
_LANE = 128


def _round_up(x, m):
    return ((x + m - 1) // m) * m


# ----------------------------------------------------------------------------
# Kernels
# ----------------------------------------------------------------------------

def _matmul_bias_single_k_kernel(a_ref, b_ref, bias_ref, o_ref):
    """Single K step: fused bias, one store, no accumulator scratch."""
    o_ref[...] = (
        jnp.dot(a_ref[...], b_ref[...], preferred_element_type=jnp.float32)
        + bias_ref[...].astype(jnp.float32)
    ).astype(o_ref.dtype)


def _matmul_bias_multi_k_kernel(a_ref, b_ref, bias_ref, o_ref):
    """Grid = (M/tm, N/tn, K/tk), reduction innermost.

    The f32 output block is resident across the K axis, so we accumulate
    directly into it (seeded with the bias) -- no separate acc scratch.
    """
    @pl.when(pl.program_id(2) == 0)
    def _():
        o_ref[...] = jnp.broadcast_to(
            bias_ref[...].astype(o_ref.dtype), o_ref.shape)

    o_ref[...] += jnp.dot(a_ref[...], b_ref[...],
                          preferred_element_type=jnp.float32)


# ----------------------------------------------------------------------------
# Tiling policy
# ----------------------------------------------------------------------------

def _pick_tile(dim, align, max_tile):
    """Return (tile, padded_dim). Tile is a multiple of `align`, divides the
    padded dim, and never degenerates to tiny sizes for large dims."""
    if dim <= max_tile:
        t = _round_up(dim, align)
        return t, t                      # single (possibly padded) block
    for t in (max_tile, max_tile // 2, 512, 256, 128):
        if t >= align and t % align == 0 and dim % t == 0:
            return t, dim
    # No clean divisor: pad up to a multiple of 128 (small waste, aligned).
    t = max(128, align)
    return t, _round_up(dim, t)


def _pick_k_tile(K, tk_cap):
    if K <= tk_cap:
        return K, K                      # full-extent block, single K step
    for t in (tk_cap, 1024, 512, 256):
        if t <= tk_cap and K % t == 0:
            return t, K
    return 512, _round_up(K, 512)


def _proper_divisor_tile(dim, align, max_blocks=8):
    """Largest tile (multiple of `align`) splitting `dim` into >=2 blocks."""
    for nb in range(2, max_blocks + 1):
        if dim % nb == 0 and (dim // nb) % align == 0 and dim // nb >= align:
            return dim // nb
    return None


def _split_for_megacore(tm, tn, Mp, Np):
    """Ensure >= 2 iterations on the parallel grid axes so both v7x
    TensorCores get work (skipped when there is too little work to matter)."""
    if (Mp // tm) * (Np // tn) >= 2 or Mp * Np < 2 * 128 * 128:
        return tm, tn
    t = _proper_divisor_tile(Mp, _SUBLANE)
    if t is not None:
        return t, tn
    t = _proper_divisor_tile(Np, _LANE)
    if t is not None:
        return tm, t
    return tm, tn


# ----------------------------------------------------------------------------
# Pallas wrapper: (M,K) @ (K,N) + bias with fused epilogue
# ----------------------------------------------------------------------------

def pallas_matmul_bias(a, b, bias, *, out_dtype=jnp.float32):
    """a:(M,K) @ b:(K,N) + bias:(1,N), f32 MXU accumulation, bias fused.

    Pads M to a multiple of 8 and N to a multiple of 128 (lane-dense output)
    and slices the padding back off after the call.
    """
    M, K = a.shape
    K2, N = b.shape
    assert K == K2, (a.shape, b.shape)
    assert bias.shape == (1, N), bias.shape

    itemsize = max(jnp.dtype(a.dtype).itemsize, jnp.dtype(b.dtype).itemsize)
    tk_cap = 2048 if itemsize <= 2 else 1024

    tm, Mp = _pick_tile(M, _SUBLANE, 1024)
    tn, Np = _pick_tile(N, _LANE, 1024)
    tk, Kp = _pick_k_tile(K, tk_cap)
    tm, tn = _split_for_megacore(tm, tn, Mp, Np)

    if (Mp, Kp) != (M, K):
        a = jnp.pad(a, ((0, Mp - M), (0, Kp - K)))
    if (Kp, Np) != (K, N):
        b = jnp.pad(b, ((0, Kp - K), (0, Np - N)))
    if Np != N:
        bias = jnp.pad(bias, ((0, 0), (0, Np - N)))

    grid_m, grid_n, grid_k = Mp // tm, Np // tn, Kp // tk

    # VMEM budget from the actual tile footprint: double-buffered A/B/bias
    # plus the resident / double-buffered f32 output block, with margin.
    footprint = (2 * tm * tk * jnp.dtype(a.dtype).itemsize
                 + 2 * tk * tn * jnp.dtype(b.dtype).itemsize
                 + 2 * tm * tn * 4
                 + 2 * tn * 4)
    vmem_limit = int(min(max(2 * footprint + (8 << 20), 16 << 20), 48 << 20))

    if grid_k == 1:
        out = pl.pallas_call(
            _matmul_bias_single_k_kernel,
            out_shape=jax.ShapeDtypeStruct((Mp, Np), out_dtype),
            grid_spec=pltpu.PrefetchScalarGridSpec(
                num_scalar_prefetch=0,
                grid=(grid_m, grid_n),
                in_specs=[
                    pl.BlockSpec((tm, Kp), lambda i, j: (i, 0)),
                    pl.BlockSpec((Kp, tn), lambda i, j: (0, j)),
                    pl.BlockSpec((1, tn), lambda i, j: (0, j)),
                ],
                out_specs=pl.BlockSpec((tm, tn), lambda i, j: (i, j))),
            compiler_params=pltpu.CompilerParams(
                dimension_semantics=("parallel", "parallel"),
                vmem_limit_bytes=vmem_limit),
        )(a, b, bias)
        return out[:M, :N]

    out = pl.pallas_call(
        _matmul_bias_multi_k_kernel,
        out_shape=jax.ShapeDtypeStruct((Mp, Np), jnp.float32),
        grid_spec=pltpu.PrefetchScalarGridSpec(
            num_scalar_prefetch=0,
            grid=(grid_m, grid_n, grid_k),
            in_specs=[
                pl.BlockSpec((tm, tk), lambda i, j, k: (i, k)),
                pl.BlockSpec((tk, tn), lambda i, j, k: (k, j)),
                pl.BlockSpec((1, tn), lambda i, j, k: (0, j)),
            ],
            out_specs=pl.BlockSpec((tm, tn), lambda i, j, k: (i, j))),
        compiler_params=pltpu.CompilerParams(
            dimension_semantics=("parallel", "parallel", "arbitrary"),
            vmem_limit_bytes=vmem_limit),
    )(a, b, bias)
    out = out[:M, :N]
    return out if out_dtype == jnp.float32 else out.astype(out_dtype)


# ----------------------------------------------------------------------------
# LinearGeneral forward: tensordot(x, W, dims) + bias
# ----------------------------------------------------------------------------

def _normalize_dims(x_ndim, w_ndim, dims):
    if isinstance(dims, int):
        return (tuple(range(x_ndim - dims, x_ndim)), tuple(range(dims)))
    x_axes = tuple(int(a) % x_ndim for a in dims[0])
    w_axes = tuple(int(a) % w_ndim for a in dims[1])
    return x_axes, w_axes


def linear_general(x, weight, bias, dims, *, compute_dtype=jnp.bfloat16,
                   weight_2d=None, bias_2d=None):
    x_axes, w_axes = _normalize_dims(x.ndim, weight.ndim, dims)
    assert len(x_axes) == len(w_axes)
    for xa, wa in zip(x_axes, w_axes):
        assert x.shape[xa] == weight.shape[wa], (x.shape, weight.shape, dims)

    x_keep = tuple(a for a in range(x.ndim) if a not in x_axes)
    w_keep = tuple(a for a in range(weight.ndim) if a not in w_axes)

    batch_shape = tuple(x.shape[a] for a in x_keep)
    feat_shape = tuple(weight.shape[a] for a in w_keep)
    M = math.prod(batch_shape) if batch_shape else 1
    K = math.prod(x.shape[a] for a in x_axes) if x_axes else 1
    N = math.prod(feat_shape) if feat_shape else 1

    # Zero-copy (contiguous case) flatten to 2-D operands; cast hoisted here,
    # outside the kernel, so blocks that are re-streamed are already bf16.
    a2 = jnp.transpose(x, x_keep + x_axes).reshape(M, K).astype(compute_dtype)
    if weight_2d is None:
        weight_2d = (jnp.transpose(weight, w_axes + w_keep)
                     .reshape(K, N).astype(compute_dtype))
    if bias_2d is None:
        bias_2d = jnp.broadcast_to(jnp.asarray(bias, jnp.float32),
                                   feat_shape).reshape(1, N)

    out = pallas_matmul_bias(a2, weight_2d, bias_2d, out_dtype=jnp.float32)
    return out.reshape(batch_shape + feat_shape)


class LinearGeneral:
    """JAX/Pallas port of the PyTorch LinearGeneral module (eval semantics)."""

    def __init__(self, in_dim, feat_dim, key, param_dtype=jnp.bfloat16):
        self.in_dim = tuple(in_dim)
        self.feat_dim = tuple(feat_dim)
        # torch.randn weight init, zero bias; bf16 params halve weight DMA
        # bytes, accumulation stays f32.
        self.weight = jax.random.normal(
            key, self.in_dim + self.feat_dim, jnp.float32).astype(param_dtype)
        self.bias = jnp.zeros(self.feat_dim, jnp.float32)

    def __call__(self, x, dims, compute_dtype=jnp.bfloat16):
        _, w_axes = _normalize_dims(x.ndim, self.weight.ndim, dims)
        K = math.prod(self.in_dim) if self.in_dim else 1
        N = math.prod(self.feat_dim) if self.feat_dim else 1
        weight_2d = bias_2d = None
        # Fast path (common case): contraction over the leading in_dim axes
        # in order -> the (K, N) flatten is a zero-copy reshape, no per-call
        # transpose of the weight.
        if w_axes == tuple(range(len(self.in_dim))):
            weight_2d = self.weight.reshape(K, N).astype(compute_dtype)
            bias_2d = jnp.broadcast_to(self.bias.astype(jnp.float32),
                                       self.feat_dim).reshape(1, N)
        return linear_general(x, self.weight, self.bias, dims,
                              compute_dtype=compute_dtype,
                              weight_2d=weight_2d, bias_2d=bias_2d)


# ----------------------------------------------------------------------------

def _check(got, want, name, tol=1e-2):
    got = np.asarray(got, np.float32)
    want = np.asarray(want, np.float32)
    err = float(np.max(np.abs(got - want)))
    scale = float(np.max(np.abs(want))) + 1e-6
    assert err <= tol * scale, f"{name}: max-err={err:.4e} scale={scale:.4e}"


if __name__ == "__main__":
    root = jax.random.PRNGKey(0)
    k1, k2, k3, k4, k5, k6, k7, k8, k9 = jax.random.split(root, 9)

    # --- Case A: qkv-style projection, 128-aligned, exercises megacore split
    # x:(B,S,D) . W:(D,H,HD) with dims=([2],[0]) -> (B,S,H,HD)
    B, S, D, H, HD = 2, 128, 256, 4, 64
    lg_a = LinearGeneral((D,), (H, HD), k1)
    lg_a.bias = 0.1 * jax.random.normal(k2, (H, HD), jnp.float32)
    xa = jax.random.normal(k3, (B, S, D), jnp.float32).astype(jnp.bfloat16)
    ya = jax.jit(lambda t: lg_a(t, dims=([2], [0])))(xa)

    # --- Case B: output projection with small/odd dims (N padded to 128) ----
    # x:(b,s,h,hd) . W:(h,hd,d) with dims=([2,3],[0,1]) -> (b,s,d)
    b2, s2, h2, hd2, d2 = 2, 16, 4, 8, 32
    lg_b = LinearGeneral((h2, hd2), (d2,), k4)
    lg_b.bias = 0.1 * jax.random.normal(k5, (d2,), jnp.float32)
    xb = jax.random.normal(k6, (b2, s2, h2, hd2), jnp.float32).astype(jnp.bfloat16)
    yb = jax.jit(lambda t: lg_b(t, dims=([2, 3], [0, 1])))(xb)

    # --- Case C: long contraction -> multi-K-step accumulation path ---------
    b3, s3, d3, h3, hd3 = 2, 8, 4096, 4, 32
    lg_c = LinearGeneral((d3,), (h3, hd3), k7)
    lg_c.bias = 0.1 * jax.random.normal(k8, (h3, hd3), jnp.float32)
    xc = jax.random.normal(k9, (b3, s3, d3), jnp.float32).astype(jnp.bfloat16)
    yc = jax.jit(lambda t: lg_c(t, dims=([2], [0])))(xc)

    jax.block_until_ready((ya, yb, yc))

    assert ya.shape == (B, S, H, HD), ya.shape
    assert yb.shape == (b2, s2, d2), yb.shape
    assert yc.shape == (b3, s3, h3, hd3), yc.shape
    assert bool(jnp.isfinite(ya).all() & jnp.isfinite(yb).all()
                & jnp.isfinite(yc).all())

    # Reference in float32 numpy (exact w.r.t. the bf16 operand values).
    ya_ref = np.tensordot(np.asarray(xa, np.float32),
                          np.asarray(lg_a.weight, np.float32),
                          axes=([2], [0])) + np.asarray(lg_a.bias)
    yb_ref = np.tensordot(np.asarray(xb, np.float32),
                          np.asarray(lg_b.weight, np.float32),
                          axes=([2, 3], [0, 1])) + np.asarray(lg_b.bias)
    yc_ref = np.tensordot(np.asarray(xc, np.float32),
                          np.asarray(lg_c.weight, np.float32),
                          axes=([2], [0])) + np.asarray(lg_c.bias)

    _check(ya, ya_ref, "caseA")
    _check(yb, yb_ref, "caseB")
    _check(yc, yc_ref, "caseC")
    print("KERNEL_OK")
</pallas_src>

<mosaic_0001>
module attributes {stable_mosaic.version = 11 : i64} {
  func.func @_matmul_bias_single_k_kernel(%arg0: i32, %arg1: i32, %arg2: memref<128x256xbf16, #tpu.memory_space<vmem>>, %arg3: memref<256x256xbf16, #tpu.memory_space<vmem>>, %arg4: memref<1x256xf32, #tpu.memory_space<vmem>>, %arg5: memref<128x256xf32, #tpu.memory_space<vmem>>) attributes {dimension_semantics = [#tpu.dimension_semantics<parallel>, #tpu.dimension_semantics<parallel>], iteration_bounds = array<i64: 2, 1>, scalar_prefetch = 0 : i64, scratch_operands = 0 : i64, tpu.core_type = #tpu.core_type<tc>, window_params = [{transform_indices = @transform_0, window_bounds = array<i64: 128, 256>}, {transform_indices = @transform_1, window_bounds = array<i64: 256, 256>}, {transform_indices = @transform_2, window_bounds = array<i64: 1, 256>}, {transform_indices = @transform_3, window_bounds = array<i64: 128, 256>}]} {
    %c0 = arith.constant 0 : index
    %c0_0 = arith.constant 0 : index
    %0 = vector.load %arg2[%c0, %c0_0] : memref<128x256xbf16, #tpu.memory_space<vmem>>, vector<128x256xbf16>
    %c0_1 = arith.constant 0 : index
    %c0_2 = arith.constant 0 : index
    %1 = vector.load %arg3[%c0_1, %c0_2] : memref<256x256xbf16, #tpu.memory_space<vmem>>, vector<256x256xbf16>
    %cst = arith.constant dense<0.000000e+00> : vector<128x256xf32>
    %2 = tpu.matmul %0, %1, %cst {dimension_numbers = #tpu.dot_dimension_numbers<[1], [0], [0], [1], [0, 0, 1, 1], [], []>} : vector<128x256xbf16>, vector<256x256xbf16>, vector<128x256xf32> -> vector<128x256xf32>
    %c0_3 = arith.constant 0 : index
    %c0_4 = arith.constant 0 : index
    %3 = vector.load %arg4[%c0_3, %c0_4] : memref<1x256xf32, #tpu.memory_space<vmem>>, vector<1x256xf32>
    %4 = vector.broadcast %3 : vector<1x256xf32> to vector<128x256xf32>
    %5 = arith.addf %2, %4 : vector<128x256xf32>
    %c0_5 = arith.constant 0 : index
    %c0_6 = arith.constant 0 : index
    %6 = vector.load %arg5[%c0_5, %c0_6] : memref<128x256xf32, #tpu.memory_space<vmem>>, vector<128x256xf32>
    tpu.vector_store %arg5[%c0_5, %c0_6], %5 {strides = array<i32>} : memref<128x256xf32, #tpu.memory_space<vmem>>, vector<128x256xf32>,
    return
  }
  func.func @transform_0(%arg0: i32, %arg1: i32) -> (i32, i32) {
    %c0_i32 = arith.constant 0 : i32
    %c0_i32_0 = arith.constant 0 : i32
    return %arg0, %c0_i32 : i32, i32
  }
  func.func @transform_1(%arg0: i32, %arg1: i32) -> (i32, i32) {
    %c0_i32 = arith.constant 0 : i32
    %c0_i32_0 = arith.constant 0 : i32
    return %c0_i32, %arg1 : i32, i32
  }
  func.func @transform_2(%arg0: i32, %arg1: i32) -> (i32, i32) {
    %c0_i32 = arith.constant 0 : i32
    %c0_i32_0 = arith.constant 0 : i32
    return %c0_i32, %arg1 : i32, i32
  }
  func.func @transform_3(%arg0: i32, %arg1: i32) -> (i32, i32) {
    %c0_i32 = arith.constant 0 : i32
    return %arg0, %arg1 : i32, i32
  }
}

</mosaic_0001>

<llo_original>
// kernel: _lambda_.1
$region0: #{_lambda_.1}
  #allocation0 [shape = 'u32[]', space=smem, size = 0x4, offset = 0x4, fixed_abs, tag = 'smem constant byte address 0x4 - core index']
  #allocation1 [shape = 'u32[144,128]{1,0:T(1,128)}', space=vmem, size = 0x12000, scoped, tag = 'internal scratch']
  %s0 = inlined_call_operand.hbm [shape: bf16[256,256], index: 0, kind: input, shape index: {}]
  %s1 = inlined_call_operand.hbm [shape: bf16[256,256], index: 1, kind: input, shape index: {}]
  %s2 = inlined_call_operand.vmem [shape: f32[1,256], index: 2, kind: input, shape index: {}]
  %s3 = inlined_call_operand.vmem [shape: f32[256,256], index: 3, kind: output, shape index: {}]
  %s4 = sld [smem:[#allocation0]]
  $region53: #{_lambda_.1} parent=0
    _
  %s6 = ssub.s32 1, %s4
  %s7 = scalar_select 0, %s6, %s4
  $region1: #{_lambda_.1} parent=0
    #allocation2 [shape = 'u8[131072]{0}', space=vmem, size = 0x20000, scoped, tag = 'input window, operand 0']
    #allocation3 [shape = 's32[2]{0}', space=sflag, size = 0x8, scoped, tag = 'scoped memory for _lambda_.1']
    #allocation4 [shape = 'u8[131072]{0}', space=vmem, size = 0x20000, scoped, tag = 'input window, operand 1, single buffered']
    #allocation5 [shape = 's32[1]{0}', space=sflag, size = 0x4, scoped, tag = 'scoped memory for _lambda_.1']
    %8 = vsyncpa [#allocation3], 0
    %s9 = scalar_lea.sflag [#allocation3], 1
    %10 = vsyncpa %s9, 0
    %11 = vsyncpa [#allocation5], 0
    loop: start=0, step=1, limit=4
    $region2: #{_lambda_.1} parent=1 // loop_pre_header
      _
    $region3: #{_lambda_.1} parent=1 // loop_header
      %s13 = sphi 0, %s17
      %p14 = scmp.ge.s32.totalorder %s13, 4
      %s20 = sphi 0, %s32
      %s21 = sphi 0, %s28
      %s22 = sphi 0, %s20
      %s23 = sphi 0, %s21
      %s24 = sphi 0, %s22
      %s25 = sphi 0, %s23
      %s35 = sphi 0, %s37
      %s38 = sphi 0, %s35
      %s39 = sphi 0, %s38
      %s55 = sphi 0, %s39
      %s61 = sphi 0, %s63
      %s64 = sphi 0, %s61
      %s65 = sphi 0, %s64
      %s81 = sphi 0, %s65
      %s87 = sphi 0, %s89
      %s90 = sphi 0, %s87
      %s91 = sphi 0, %s90
      %s107 = sphi 0, %s91
      %s115 = sphi 0, %s117
      %s118 = sphi 0, %s115
      %s119 = sphi 0, %s118
      %s135 = sphi 0, %s119
    $region4: #{_lambda_.1} parent=1 // loop_header_branch
      %16 = sbr.rel (%p14) target = $region8
    $region5: #{_lambda_.1} parent=1 // loop_body
      %s18 = ssub.s32 %s13, 1
      %s19 = ssub.s32 %s13, 2
      %s26 = sadd.s32 1, %s21
      %p27 = scmp.ge.s32.totalorder %s26, 1
      %s28 = scalar_select %p27, 0, %s26
      %s29 = sadd.s32 1, %s20
      %s30 = scalar_select %p27, %s29, %s20
      %p31 = scmp.ge.s32.totalorder %s30, 2
      %s32 = scalar_select %p31, 0, %s30
      %s33 = ssub.s32 %s20, %s32
      %p34 = scmp.eq.s32.totalorder %s33, 0
      %s36 = sadd.s32 %s35, 1
      %s37 = scalar_select %p34, %s35, %s36
      %p40 = pneg %p34
      %p41 = scmp.eq.s32.totalorder %s13, 1
      %p42 = por %p40, %p41
      %p43 = scmp.ne.s32.totalorder %s35, %s38
      %p44 = scmp.eq.s32.totalorder %s13, 0
      %p45 = por %p43, %p44
      %p46 = scmp.ne.s32.totalorder %s35, %s38
      %p47 = scmp.eq.s32.totalorder %s18, 1
      %p48 = por %p46, %p47
      %p49 = scmp.ne.s32.totalorder %s38, %s39
      %p50 = scmp.eq.s32.totalorder %s18, 0
      %p51 = por %p49, %p50
      %p52 = scmp.ne.s32.totalorder %s38, %s39
      %p53 = scmp.eq.s32.totalorder %s19, 1
      %p54 = por %p52, %p53
      %p56 = scmp.ne.s32.totalorder %s39, %s55
      %p57 = scmp.eq.s32.totalorder %s19, 0
      %p58 = por %p56, %p57
      %s59 = ssub.s32 %s21, %s28
      %p60 = scmp.eq.s32.totalorder %s59, 0
      %s62 = sadd.s32 %s61, 1
      %s63 = scalar_select %p60, %s61, %s62
      %p66 = pneg %p60
      %p67 = scmp.eq.s32.totalorder %s13, 1
      %p68 = por %p66, %p67
      %p69 = scmp.ne.s32.totalorder %s61, %s64
      %p70 = scmp.eq.s32.totalorder %s13, 0
      %p71 = por %p69, %p70
      %p72 = scmp.ne.s32.totalorder %s61, %s64
      %p73 = scmp.eq.s32.totalorder %s18, 1
      %p74 = por %p72, %p73
      %p75 = scmp.ne.s32.totalorder %s64, %s65
      %p76 = scmp.eq.s32.totalorder %s18, 0
      %p77 = por %p75, %p76
      %p78 = scmp.ne.s32.totalorder %s64, %s65
      %p79 = scmp.eq.s32.totalorder %s19, 1
      %p80 = por %p78, %p79
      %p82 = scmp.ne.s32.totalorder %s65, %s81
      %p83 = scmp.eq.s32.totalorder %s19, 0
      %p84 = por %p82, %p83
      %s85 = ssub.s32 %s21, %s28
      %p86 = scmp.eq.s32.totalorder %s85, 0
      %s88 = sadd.s32 %s87, 1
      %s89 = scalar_select %p86, %s87, %s88
      %p92 = pneg %p86
      %p93 = scmp.eq.s32.totalorder %s13, 1
      %p94 = por %p92, %p93
      %p95 = scmp.ne.s32.totalorder %s87, %s90
      %p96 = scmp.eq.s32.totalorder %s13, 0
      %p97 = por %p95, %p96
      %p98 = scmp.ne.s32.totalorder %s87, %s90
      %p99 = scmp.eq.s32.totalorder %s18, 1
      %p100 = por %p98, %p99
      %p101 = scmp.ne.s32.totalorder %s90, %s91
      %p102 = scmp.eq.s32.totalorder %s18, 0
      %p103 = por %p101, %p102
      %p104 = scmp.ne.s32.totalorder %s90, %s91
      %p105 = scmp.eq.s32.totalorder %s19, 1
      %p106 = por %p104, %p105
      %p108 = scmp.ne.s32.totalorder %s91, %s107
      %p109 = scmp.eq.s32.totalorder %s19, 0
      %p110 = por %p108, %p109
      %s111 = ssub.s32 %s20, %s32
      %s112 = ssub.s32 %s21, %s28
      %s113 = sor.u32 %s111, %s112
      %p114 = scmp.eq.s32.totalorder %s113, 0
      %s116 = sadd.s32 %s115, 1
      %s117 = scalar_select %p114, %s115, %s116
      %p120 = pneg %p114
      %p121 = scmp.eq.s32.totalorder %s13, 1
      %p122 = por %p120, %p121
      %p123 = scmp.ne.s32.totalorder %s115, %s118
      %p124 = scmp.eq.s32.totalorder %s13, 0
      %p125 = por %p123, %p124
      %p126 = scmp.ne.s32.totalorder %s115, %s118
      %p127 = scmp.eq.s32.totalorder %s18, 1
      %p128 = por %p126, %p127
      %p129 = scmp.ne.s32.totalorder %s118, %s119
      %p130 = scmp.eq.s32.totalorder %s18, 0
      %p131 = por %p129, %p130
      %p132 = scmp.ne.s32.totalorder %s118, %s119
      %p133 = scmp.eq.s32.totalorder %s19, 1
      %p134 = por %p132, %p133
      %p136 = scmp.ne.s32.totalorder %s119, %s135
      %p137 = scmp.eq.s32.totalorder %s19, 0
      %p138 = por %p136, %p137
      %p139 = scmp.le.s32.totalorder 1, %s13
      %p140 = scmp.lt.s32.totalorder %s13, 3
      %p141 = pnand %p139, %p140
      %p142 = pneg %p141
      // Predicated region
      $region9: #{_lambda_.1} parent=5 // pred_check
        _
      $region10: #{_lambda_.1} parent=5 // pred_check_branch
        %144 = sbr.rel (%p141) target = $region12
      $region11: #{_lambda_.1} parent=5 // pred_region
        %s145 = ssub.s32 %s13, 1
        // Predicated region
        $region13: #{_lambda_.1} parent=11 // pred_check
          %p146 = pneg %p77
        $region14: #{_lambda_.1} parent=11 // pred_check_branch
          %148 = sbr.rel (%p146) target = $region16
        $region15: #{_lambda_.1} parent=11 // pred_region
          %s149 = smul.u32 2, %s23
          %s151 = ssub.s32 4096, 4096
          %152 = vsyncadd [#allocation5], %s151
          %s153 = smul.addr %s149, 64
          %s154 = scalar_lea.hbm %s1, %s153
          %s155 = sshll.u32 [#allocation4], 4
          %s156 = int_to_ptr.vmem [resolvable:$true] %s155
          %161 = dma.hbm_to_vmem [thread:$0]  %s154, 4096, %s156, [#allocation5], 128, 128, 8
        $region16: #{_lambda_.1} parent=11 // pred_fallthru
          _
        // Predicated region
        $region17: #{_lambda_.1} parent=11 // pred_check
          %p162 = pneg %p103
        $region18: #{_lambda_.1} parent=11 // pred_check_branch
          %164 = sbr.rel (%p162) target = $region20
        $region19: #{_lambda_.1} parent=11 // pred_region
          %s165 = smul.u32 2, %s23
          %p166 = scmp.lt.s32.totalorder %s165, 1
          %s167 = scalar_select %p166, %s165, 1
          %s168 = scalar_lea.vmem %s2, %s167
          %s169 = smul.u32 2, %s23
        $region20: #{_lambda_.1} parent=11 // pred_fallthru
          _
      $region12: #{_lambda_.1} parent=5 // pred_fallthru
        _
      %p170 = scmp.lt.s32.totalorder %s13, 2
      // Predicated region
      $region21: #{_lambda_.1} parent=5 // pred_check
        %p171 = pneg %p170
      $region22: #{_lambda_.1} parent=5 // pred_check_branch
        %173 = sbr.rel (%p171) target = $region24
      $region23: #{_lambda_.1} parent=5 // pred_region
        // Predicated region
        $region25: #{_lambda_.1} parent=23 // pred_check
          %p174 = pneg %p45
        $region26: #{_lambda_.1} parent=23 // pred_check_branch
          %176 = sbr.rel (%p174) target = $region28
        $region27: #{_lambda_.1} parent=23 // pred_region
          %s177 = sand.u32 %s35, 1
          %s178 = scalar_lea.sflag [#allocation3], %s177
          %s179 = sand.u32 %s35, 1
          %s180 = smul.addr %s179, 128
          %s181 = scalar_lea.vmem [#allocation2], %s180
          %s182 = smul.u32 16, %s20
          %s184 = ssub.s32 2048, 2048
          %185 = vsyncadd %s178, %s184
          %s186 = smul.addr %s182, 2
          %s187 = smul.addr %s186, 64
          %s188 = scalar_lea.hbm %s0, %s187
          %s189 = sshll.u32 %s181, 4
          %s190 = int_to_ptr.vmem [resolvable:$true] %s189
          %195 = dma.hbm_to_vmem [thread:$0]  %s188, 2048, %s190, %s178, 128, 128, 8
        $region28: #{_lambda_.1} parent=23 // pred_fallthru
          _
      $region24: #{_lambda_.1} parent=5 // pred_fallthru
        _
      %p196 = scmp.le.s32.totalorder 1, %s13
      %p197 = scmp.lt.s32.totalorder %s13, 3
      %p198 = pnand %p196, %p197
      %p199 = pneg %p198
      // Predicated region
      $region29: #{_lambda_.1} parent=5 // pred_check
        _
      $region30: #{_lambda_.1} parent=5 // pred_check_branch
        %201 = sbr.rel (%p198) target = $region32
      $region31: #{_lambda_.1} parent=5 // pred_region
        %s202 = ssub.s32 %s13, 1
        %s203 = sand.u32 %s38, 1
        %s204 = scalar_lea.sflag [#allocation3], %s203
        %s205 = sand.u32 %s38, 1
        %s206 = smul.addr %s205, 128
        %s207 = scalar_lea.vmem [#allocation2], %s206
        // Predicated region
        $region33: #{_lambda_.1} parent=31 // pred_check
          %p208 = pneg %p51
        $region34: #{_lambda_.1} parent=31 // pred_check_branch
          %210 = sbr.rel (%p208) target = $region36
        $region35: #{_lambda_.1} parent=31 // pred_region
          %211 = dma.done %s204, 2048
        $region36: #{_lambda_.1} parent=31 // pred_fallthru
          _
        // Predicated region
        $region37: #{_lambda_.1} parent=31 // pred_check
          %p212 = pneg %p77
        $region38: #{_lambda_.1} parent=31 // pred_check_branch
          %214 = sbr.rel (%p212) target = $region40
        $region39: #{_lambda_.1} parent=31 // pred_region
          %215 = dma.done [#allocation5], 4096
        $region40: #{_lambda_.1} parent=31 // pred_fallthru
          _
        %s216 = sand.u32 %s38, 1
        %s217 = scalar_lea.sflag [#allocation3], %s216
        %s218 = sand.u32 %s38, 1
        %s219 = smul.addr %s218, 128
        %s220 = scalar_lea.vmem [#allocation2], %s219
        %p221 = pneg %p51
        %p222 = pneg %p48
        %p223 = pneg %p77
        %p224 = pneg %p74
        %s225 = smul.u32 2, %s23
        %p226 = scmp.lt.s32.totalorder %s225, 1
        %s227 = scalar_select %p226, %s225, 1
        %s228 = scalar_lea.vmem %s2, %s227
        %p229 = pneg %p103
        %p230 = pneg %p100
        %p231 = pneg %p131
        %p232 = pneg %p128
        %s233 = smul.u32 16, %s22
        %s234 = smul.u32 2, %s23
        %p235 = scmp.lt.s32.totalorder %s233, 31
        %s236 = scalar_select %p235, %s233, 31
        %p237 = scmp.lt.s32.totalorder %s234, 1
        %s238 = scalar_select %p237, %s234, 1
        %s239 = smul.addr %s236, 2
        %s240 = sadd.s32 %s238, %s239
        %s241 = smul.addr %s240, 8
        %s242 = scalar_lea.vmem %s3, %s241
        %s243 = smul.u32 16, %s22
        %s244 = smul.u32 2, %s23
        %s245 = smul.u32 2, %s23
        %p246 = scmp.lt.s32.totalorder %s245, 1
        %s247 = scalar_select %p246, %s245, 1
        %s248 = scalar_lea.vmem %s2, %s247
        %s249 = smul.u32 2, %s23
        %s250 = smul.u32 16, %s22
        %s251 = smul.u32 2, %s23
        %p252 = scmp.lt.s32.totalorder %s250, 31
        %s253 = scalar_select %p252, %s250, 31
        %p254 = scmp.lt.s32.totalorder %s251, 1
        %s255 = scalar_select %p254, %s251, 1
        %s256 = smul.addr %s253, 2
        %s257 = sadd.s32 %s255, %s256
        %s258 = smul.addr %s257, 8
        %s259 = scalar_lea.vmem %s3, %s258
        %s260 = smul.u32 16, %s22
        %s261 = smul.u32 2, %s23
        %v262 = vld [vmem:[%s207] sm:$0xff]
        %v263 = vld [vmem:[%s207 + $0x8] sm:$0xff]
        %v264 = vld [vmem:[%s207 + $0x10] sm:$0xff]
        %v265 = vld [vmem:[%s207 + $0x18] sm:$0xff]
        %v266 = vld [vmem:[%s207 + $0x20] sm:$0xff]
        %v267 = vld [vmem:[%s207 + $0x28] sm:$0xff]
        %v268 = vld [vmem:[%s207 + $0x30] sm:$0xff]
        %v269 = vld [vmem:[%s207 + $0x38] sm:$0xff]
        %v270 = vld [vmem:[%s207 + $0x40] sm:$0xff]
        %v271 = vld [vmem:[%s207 + $0x48] sm:$0xff]
        %v272 = vld [vmem:[%s207 + $0x50] sm:$0xff]
        %v273 = vld [vmem:[%s207 + $0x58] sm:$0xff]
        %v274 = vld [vmem:[%s207 + $0x60] sm:$0xff]
        %v275 = vld [vmem:[%s207 + $0x68] sm:$0xff]
        %v276 = vld [vmem:[%s207 + $0x70] sm:$0xff]
        %v277 = vld [vmem:[%s207 + $0x78] sm:$0xff]
        %v278 = vld [vmem:[#allocation4] sm:$0xff]
        %v279 = vld [vmem:[#allocation4 + $0x8] sm:$0xff]
        %v280 = vld [vmem:[#allocation4 + $0x10] sm:$0xff]
        %v281 = vld [vmem:[#allocation4 + $0x18] sm:$0xff]
        %v282 = vld [vmem:[#allocation4 + $0x20] sm:$0xff]
        %v283 = vld [vmem:[#allocation4 + $0x28] sm:$0xff]
        %v284 = vld [vmem:[#allocation4 + $0x30] sm:$0xff]
        %v285 = vld [vmem:[#allocation4 + $0x38] sm:$0xff]
        %v286 = vld [vmem:[#allocation4 + $0x40] sm:$0xff]
        %v287 = vld [vmem:[#allocation4 + $0x48] sm:$0xff]
        %v288 = vld [vmem:[#allocation4 + $0x50] sm:$0xff]
        %v289 = vld [vmem:[#allocation4 + $0x58] sm:$0xff]
        %v290 = vld [vmem:[#allocation4 + $0x60] sm:$0xff]
        %v291 = vld [vmem:[#allocation4 + $0x68] sm:$0xff]
        %v292 = vld [vmem:[#allocation4 + $0x70] sm:$0xff]
        %v293 = vld [vmem:[#allocation4 + $0x78] sm:$0xff]
        %v294 = vld [vmem:[#allocation4 + $0x80] sm:$0xff]
        %v295 = vld [vmem:[#allocation4 + $0x88] sm:$0xff]
        %v296 = vld [vmem:[#allocation4 + $0x90] sm:$0xff]
        %v297 = vld [vmem:[#allocation4 + $0x98] sm:$0xff]
        %v298 = vld [vmem:[#allocation4 + $0xa0] sm:$0xff]
        %v299 = vld [vmem:[#allocation4 + $0xa8] sm:$0xff]
        %v300 = vld [vmem:[#allocation4 + $0xb0] sm:$0xff]
        %v301 = vld [vmem:[#allocation4 + $0xb8] sm:$0xff]
        %v302 = vld [vmem:[#allocation4 + $0xc0] sm:$0xff]
        %v303 = vld [vmem:[#allocation4 + $0xc8] sm:$0xff]
        %v304 = vld [vmem:[#allocation4 + $0xd0] sm:$0xff]
        %v305 = vld [vmem:[#allocation4 + $0xd8] sm:$0xff]
        %v306 = vld [vmem:[#allocation4 + $0xe0] sm:$0xff]
        %v307 = vld [vmem:[#allocation4 + $0xe8] sm:$0xff]
        %v308 = vld [vmem:[#allocation4 + $0xf0] sm:$0xff]
        %v309 = vld [vmem:[#allocation4 + $0xf8] sm:$0xff]
        %v310 = vld [vmem:[%s248] sm:$0x3]
        %v312 = vlaneseq
        %v313 = vshrl.u32 %v312, 7
        %v314 = vsub.s32 0, %v313
        %v315 = vrot.slane %v310, %v314
        %v316 = vlaneseq
        %v317 = vshrl.u32 %v316, 7
        %v318 = vsub.s32 1, %v317
        %v319 = vrot.slane %v310, %v318
        %v338 = vunpack.c.l.b16 %v262
        %v339 = vunpack.c.h.b16 %v262
        %v340 = vunpack.c.l.b16 %v263
        %v341 = vunpack.c.h.b16 %v263
        %v342 = vunpack.c.l.b16 %v264
        %v343 = vunpack.c.h.b16 %v264
        %v344 = vunpack.c.l.b16 %v265
        %v345 = vunpack.c.h.b16 %v265
        %v346 = vunpack.c.l.b16 %v266
        %v347 = vunpack.c.h.b16 %v266
        %v348 = vunpack.c.l.b16 %v267
        %v349 = vunpack.c.h.b16 %v267
        %v350 = vunpack.c.l.b16 %v268
        %v351 = vunpack.c.h.b16 %v268
        %v352 = vunpack.c.l.b16 %v269
        %v353 = vunpack.c.h.b16 %v269
        %v354 = vunpack.c.l.b16 %v270
        %v355 = vunpack.c.h.b16 %v270
        %v356 = vunpack.c.l.b16 %v271
        %v357 = vunpack.c.h.b16 %v271
        %v358 = vunpack.c.l.b16 %v272
        %v359 = vunpack.c.h.b16 %v272
        %v360 = vunpack.c.l.b16 %v273
        %v361 = vunpack.c.h.b16 %v273
        %v362 = vunpack.c.l.b16 %v274
        %v363 = vunpack.c.h.b16 %v274
        %v364 = vunpack.c.l.b16 %v275
        %v365 = vunpack.c.h.b16 %v275
        %v366 = vunpack.c.l.b16 %v276
        %v367 = vunpack.c.h.b16 %v276
        %v368 = vunpack.c.l.b16 %v277
        %v369 = vunpack.c.h.b16 %v277
        %v370 = vpack.c.b16 %v340, %v338
        %v371 = vpack.c.b16 %v341, %v339
        %v372 = vpack.c.b16 %v344, %v342
        %v373 = vpack.c.b16 %v345, %v343
        %v374 = vpack.c.b16 %v348, %v346
        %v375 = vpack.c.b16 %v349, %v347
        %v376 = vpack.c.b16 %v352, %v350
        %v377 = vpack.c.b16 %v353, %v351
        %v378 = vpack.c.b16 %v356, %v354
        %v379 = vpack.c.b16 %v357, %v355
        %v380 = vpack.c.b16 %v360, %v358
        %v381 = vpack.c.b16 %v361, %v359
        %v382 = vpack.c.b16 %v364, %v362
        %v383 = vpack.c.b16 %v365, %v363
        %v384 = vpack.c.b16 %v368, %v366
        %v385 = vpack.c.b16 %v369, %v367
        %v434 = vunpack.c.l.b16 %v278
        %v435 = vunpack.c.h.b16 %v278
        %v436 = vunpack.c.l.b16 %v279
        %v437 = vunpack.c.h.b16 %v279
        %v438 = vunpack.c.l.b16 %v280
        %v439 = vunpack.c.h.b16 %v280
        %v440 = vunpack.c.l.b16 %v281
        %v441 = vunpack.c.h.b16 %v281
        %v442 = vunpack.c.l.b16 %v282
        %v443 = vunpack.c.h.b16 %v282
        %v444 = vunpack.c.l.b16 %v283
        %v445 = vunpack.c.h.b16 %v283
        %v446 = vunpack.c.l.b16 %v284
        %v447 = vunpack.c.h.b16 %v284
        %v448 = vunpack.c.l.b16 %v285
        %v449 = vunpack.c.h.b16 %v285
        %v450 = vunpack.c.l.b16 %v286
        %v451 = vunpack.c.h.b16 %v286
        %v452 = vunpack.c.l.b16 %v287
        %v453 = vunpack.c.h.b16 %v287
        %v454 = vunpack.c.l.b16 %v288
        %v455 = vunpack.c.h.b16 %v288
        %v456 = vunpack.c.l.b16 %v289
        %v457 = vunpack.c.h.b16 %v289
        %v458 = vunpack.c.l.b16 %v290
        %v459 = vunpack.c.h.b16 %v290
        %v460 = vunpack.c.l.b16 %v291
        %v461 = vunpack.c.h.b16 %v291
        %v462 = vunpack.c.l.b16 %v292
        %v463 = vunpack.c.h.b16 %v292
        %v464 = vunpack.c.l.b16 %v293
        %v465 = vunpack.c.h.b16 %v293
        %v466 = vunpack.c.l.b16 %v294
        %v467 = vunpack.c.h.b16 %v294
        %v468 = vunpack.c.l.b16 %v295
        %v469 = vunpack.c.h.b16 %v295
        %v470 = vunpack.c.l.b16 %v296
        %v471 = vunpack.c.h.b16 %v296
        %v472 = vunpack.c.l.b16 %v297
        %v473 = vunpack.c.h.b16 %v297
        %v474 = vunpack.c.l.b16 %v298
        %v475 = vunpack.c.h.b16 %v298
        %v476 = vunpack.c.l.b16 %v299
        %v477 = vunpack.c.h.b16 %v299
        %v478 = vunpack.c.l.b16 %v300
        %v479 = vunpack.c.h.b16 %v300
        %v480 = vunpack.c.l.b16 %v301
        %v481 = vunpack.c.h.b16 %v301
        %v482 = vunpack.c.l.b16 %v302
        %v483 = vunpack.c.h.b16 %v302
        %v484 = vunpack.c.l.b16 %v303
        %v485 = vunpack.c.h.b16 %v303
        %v486 = vunpack.c.l.b16 %v304
        %v487 = vunpack.c.h.b16 %v304
        %v488 = vunpack.c.l.b16 %v305
        %v489 = vunpack.c.h.b16 %v305
        %v490 = vunpack.c.l.b16 %v306
        %v491 = vunpack.c.h.b16 %v306
        %v492 = vunpack.c.l.b16 %v307
        %v493 = vunpack.c.h.b16 %v307
        %v494 = vunpack.c.l.b16 %v308
        %v495 = vunpack.c.h.b16 %v308
        %v496 = vunpack.c.l.b16 %v309
        %v497 = vunpack.c.h.b16 %v309
        %v498 = vpack.c.b16 %v436, %v434
        %v499 = vpack.c.b16 %v437, %v435
        %v500 = vpack.c.b16 %v440, %v438
        %v501 = vpack.c.b16 %v441, %v439
        %v502 = vpack.c.b16 %v444, %v442
        %v503 = vpack.c.b16 %v445, %v443
        %v504 = vpack.c.b16 %v448, %v446
        %v505 = vpack.c.b16 %v449, %v447
        %v506 = vpack.c.b16 %v452, %v450
        %v507 = vpack.c.b16 %v453, %v451
        %v508 = vpack.c.b16 %v456, %v454
        %v509 = vpack.c.b16 %v457, %v455
        %v510 = vpack.c.b16 %v460, %v458
        %v511 = vpack.c.b16 %v461, %v459
        %v512 = vpack.c.b16 %v464, %v462
        %v513 = vpack.c.b16 %v465, %v463
        %v514 = vpack.c.b16 %v468, %v466
        %v515 = vpack.c.b16 %v469, %v467
        %v516 = vpack.c.b16 %v472, %v470
        %v517 = vpack.c.b16 %v473, %v471
        %v518 = vpack.c.b16 %v476, %v474
        %v519 = vpack.c.b16 %v477, %v475
        %v520 = vpack.c.b16 %v480, %v478
        %v521 = vpack.c.b16 %v481, %v479
        %v522 = vpack.c.b16 %v484, %v482
        %v523 = vpack.c.b16 %v485, %v483
        %v524 = vpack.c.b16 %v488, %v486
        %v525 = vpack.c.b16 %v489, %v487
        %v526 = vpack.c.b16 %v492, %v490
        %v527 = vpack.c.b16 %v493, %v491
        %v528 = vpack.c.b16 %v496, %v494
        %v529 = vpack.c.b16 %v497, %v495
        %562 = vmatprep.subr.bf16.mxu0 %v513
        %563 = vmatpush1.bf16.msra.mxu0 %v512
        %564 = vmatprep.subr.bf16.mxu0 %v511
        %565 = vmatpush1.bf16.msra.mxu0 %v510
        %566 = vmatprep.subr.bf16.mxu0 %v509
        %567 = vmatpush1.bf16.msra.mxu0 %v508
        %568 = vmatprep.subr.bf16.mxu0 %v507
        %569 = vmatpush1.bf16.msra.mxu0 %v506
        %570 = vmatprep.subr.bf16.mxu0 %v505
        %571 = vmatpush1.bf16.msra.mxu0 %v504
        %572 = vmatprep.subr.bf16.mxu0 %v503
        %573 = vmatpush1.bf16.msra.mxu0 %v502
        %574 = vmatprep.subr.bf16.mxu0 %v501
        %575 = vmatpush1.bf16.msra.mxu0 %v500
        %576 = vmatprep.subr.bf16.mxu0 %v499
        %577 = vmatpush1.bf16.msra.mxu0 %v498
        %578 = vmatprep.subr.bf16.mxu0 %v529
        %579 = vmatpush2.bf16.msra.mxu0 %v528
        %580 = vmatprep.subr.bf16.mxu0 %v527
        %581 = vmatpush2.bf16.msra.mxu0 %v526
        %582 = vmatprep.subr.bf16.mxu0 %v525
        %583 = vmatpush2.bf16.msra.mxu0 %v524
        %584 = vmatprep.subr.bf16.mxu0 %v523
        %585 = vmatpush2.bf16.msra.mxu0 %v522
        %586 = vmatprep.subr.bf16.mxu0 %v521
        %587 = vmatpush2.bf16.msra.mxu0 %v520
        %588 = vmatprep.subr.bf16.mxu0 %v519
        %589 = vmatpush2.bf16.msra.mxu0 %v518
        %590 = vmatprep.subr.bf16.mxu0 %v517
        %591 = vmatpush2.bf16.msra.mxu0 %v516
        %592 = vmatprep.subr.bf16.mxu0 %v515
        %593 = vmatpush2.bf16.msra.mxu0 %v514
        %594 = vmatprep.mubr.bf16.mxu0 %v371
        %595 = vmatmul.mubr.bf16.gmra.mxu0 %v370
        %v596 = vpop.f32.mrf.mxu0
        %v597 = vadd.f32 %v315, %v596
        %v598 = vpop.f32.mrf.mxu0
        %v599 = vadd.f32 %v319, %v598
        %v600 = vpop.f32.mrf.mxu0
        %v601 = vadd.f32 %v315, %v600
        %v602 = vpop.f32.mrf.mxu0
        %v603 = vadd.f32 %v319, %v602
        %604 = vmatprep.mubr.bf16.mxu0 %v373
        %605 = vmatmul.mubr.bf16.gmra.mxu0 %v372
        %v606 = vpop.f32.mrf.mxu0
        %v607 = vadd.f32 %v315, %v606
        %v608 = vpop.f32.mrf.mxu0
        %v609 = vadd.f32 %v319, %v608
        %v610 = vpop.f32.mrf.mxu0
        %v611 = vadd.f32 %v315, %v610
        %v612 = vpop.f32.mrf.mxu0
        %v613 = vadd.f32 %v319, %v612
        %614 = vmatprep.mubr.bf16.mxu0 %v375
        %615 = vmatmul.mubr.bf16.gmra.mxu0 %v374
        %v616 = vpop.f32.mrf.mxu0
        %v617 = vadd.f32 %v315, %v616
        %v618 = vpop.f32.mrf.mxu0
        %v619 = vadd.f32 %v319, %v618
        %v620 = vpop.f32.mrf.mxu0
        %v621 = vadd.f32 %v315, %v620
        %v622 = vpop.f32.mrf.mxu0
        %v623 = vadd.f32 %v319, %v622
        %624 = vmatprep.mubr.bf16.mxu0 %v377
        %625 = vmatmul.mubr.bf16.gmra.mxu0 %v376
        %v626 = vpop.f32.mrf.mxu0
        %v627 = vadd.f32 %v315, %v626
        %v628 = vpop.f32.mrf.mxu0
        %v629 = vadd.f32 %v319, %v628
        %v630 = vpop.f32.mrf.mxu0
        %v631 = vadd.f32 %v315, %v630
        %v632 = vpop.f32.mrf.mxu0
        %v633 = vadd.f32 %v319, %v632
        %634 = vmatprep.mubr.bf16.mxu0 %v379
        %635 = vmatmul.mubr.bf16.gmra.mxu0 %v378
        %v636 = vpop.f32.mrf.mxu0
        %v637 = vadd.f32 %v315, %v636
        %v638 = vpop.f32.mrf.mxu0
        %v639 = vadd.f32 %v319, %v638
        %v640 = vpop.f32.mrf.mxu0
        %v641 = vadd.f32 %v315, %v640
        %v642 = vpop.f32.mrf.mxu0
        %v643 = vadd.f32 %v319, %v642
        %644 = vmatprep.mubr.bf16.mxu0 %v381
        %645 = vmatmul.mubr.bf16.gmra.mxu0 %v380
        %v646 = vpop.f32.mrf.mxu0
        %v647 = vadd.f32 %v315, %v646
        %v648 = vpop.f32.mrf.mxu0
        %v649 = vadd.f32 %v319, %v648
        %v650 = vpop.f32.mrf.mxu0
        %v651 = vadd.f32 %v315, %v650
        %v652 = vpop.f32.mrf.mxu0
        %v653 = vadd.f32 %v319, %v652
        %654 = vmatprep.mubr.bf16.mxu0 %v383
        %655 = vmatmul.mubr.bf16.gmra.mxu0 %v382
        %v656 = vpop.f32.mrf.mxu0
        %v657 = vadd.f32 %v315, %v656
        %v658 = vpop.f32.mrf.mxu0
        %v659 = vadd.f32 %v319, %v658
        %v660 = vpop.f32.mrf.mxu0
        %v661 = vadd.f32 %v315, %v660
        %v662 = vpop.f32.mrf.mxu0
        %v663 = vadd.f32 %v319, %v662
        %664 = vmatprep.mubr.bf16.mxu0 %v385
        %665 = vmatmul.mubr.bf16.gmra.mxu0 %v384
        %v666 = vpop.f32.mrf.mxu0
        %v667 = vadd.f32 %v315, %v666
        %v668 = vpop.f32.mrf.mxu0
        %v669 = vadd.f32 %v319, %v668
        %v670 = vpop.f32.mrf.mxu0
        %v671 = vadd.f32 %v315, %v670
        %v672 = vpop.f32.mrf.mxu0
        %v673 = vadd.f32 %v319, %v672
        %674 = vdwg.mxu0
        %675 = vst [vmem:[%s259] sm:$0xff] %v597
        %676 = vst [vmem:[%s259 + $0x8] sm:$0xff] %v599
        %677 = vst [vmem:[%s259 + $0x10] sm:$0xff] %v601
        %678 = vst [vmem:[%s259 + $0x18] sm:$0xff] %v603
        %679 = vst [vmem:[%s259 + $0x20] sm:$0xff] %v607
        %680 = vst [vmem:[%s259 + $0x28] sm:$0xff] %v609
        %681 = vst [vmem:[%s259 + $0x30] sm:$0xff] %v611
        %682 = vst [vmem:[%s259 + $0x38] sm:$0xff] %v613
        %683 = vst [vmem:[%s259 + $0x40] sm:$0xff] %v617
        %684 = vst [vmem:[%s259 + $0x48] sm:$0xff] %v619
        %685 = vst [vmem:[%s259 + $0x50] sm:$0xff] %v621
        %686 = vst [vmem:[%s259 + $0x58] sm:$0xff] %v623
        %687 = vst [vmem:[%s259 + $0x60] sm:$0xff] %v627
        %688 = vst [vmem:[%s259 + $0x68] sm:$0xff] %v629
        %689 = vst [vmem:[%s259 + $0x70] sm:$0xff] %v631
        %690 = vst [vmem:[%s259 + $0x78] sm:$0xff] %v633
        %691 = vst [vmem:[%s259 + $0x80] sm:$0xff] %v637
        %692 = vst [vmem:[%s259 + $0x88] sm:$0xff] %v639
        %693 = vst [vmem:[%s259 + $0x90] sm:$0xff] %v641
        %694 = vst [vmem:[%s259 + $0x98] sm:$0xff] %v643
        %695 = vst [vmem:[%s259 + $0xa0] sm:$0xff] %v647
        %696 = vst [vmem:[%s259 + $0xa8] sm:$0xff] %v649
        %697 = vst [vmem:[%s259 + $0xb0] sm:$0xff] %v651
        %698 = vst [vmem:[%s259 + $0xb8] sm:$0xff] %v653
        %699 = vst [vmem:[%s259 + $0xc0] sm:$0xff] %v657
        %700 = vst [vmem:[%s259 + $0xc8] sm:$0xff] %v659
        %701 = vst [vmem:[%s259 + $0xd0] sm:$0xff] %v661
        %702 = vst [vmem:[%s259 + $0xd8] sm:$0xff] %v663
        %703 = vst [vmem:[%s259 + $0xe0] sm:$0xff] %v667
        %704 = vst [vmem:[%s259 + $0xe8] sm:$0xff] %v669
        %705 = vst [vmem:[%s259 + $0xf0] sm:$0xff] %v671
        %706 = vst [vmem:[%s259 + $0xf8] sm:$0xff] %v673
        %s707 = smul.u32 16, %s22
        %s708 = smul.u32 2, %s23
        %p709 = scmp.lt.s32.totalorder %s707, 31
        %s710 = scalar_select %p709, %s707, 31
        %p711 = scmp.lt.s32.totalorder %s708, 1
        %s712 = scalar_select %p711, %s708, 1
        %s713 = smul.addr %s710, 2
        %s714 = sadd.s32 %s712, %s713
        %s715 = smul.addr %s714, 8
        %s716 = scalar_lea.vmem %s3, %s715
        // Predicated region
        $region41: #{_lambda_.1} parent=31 // pred_check
          %p717 = pneg %p128
        $region42: #{_lambda_.1} parent=31 // pred_check_branch
          %719 = sbr.rel (%p717) target = $region44
        $region43: #{_lambda_.1} parent=31 // pred_region
          %s720 = smul.u32 16, %s22
          %s721 = smul.u32 2, %s23
        $region44: #{_lambda_.1} parent=31 // pred_fallthru
          _
      $region32: #{_lambda_.1} parent=5 // pred_fallthru
        _
      %p722 = scmp.le.s32.totalorder 2, %s13
      // Predicated region
      $region45: #{_lambda_.1} parent=5 // pred_check
        %p723 = pneg %p722
      $region46: #{_lambda_.1} parent=5 // pred_check_branch
        %725 = sbr.rel (%p723) target = $region48
      $region47: #{_lambda_.1} parent=5 // pred_region
        %s726 = ssub.s32 %s13, 2
        // Predicated region
        $region49: #{_lambda_.1} parent=47 // pred_check
          %p727 = pneg %p134
        $region50: #{_lambda_.1} parent=47 // pred_check_branch
          %729 = sbr.rel (%p727) target = $region52
        $region51: #{_lambda_.1} parent=47 // pred_region
          %s730 = smul.u32 16, %s24
          %s731 = smul.u32 2, %s25
          %p732 = scmp.lt.s32.totalorder %s730, 31
          %s733 = scalar_select %p732, %s730, 31
          %p734 = scmp.lt.s32.totalorder %s731, 1
          %s735 = scalar_select %p734, %s731, 1
          %s736 = smul.addr %s733, 2
          %s737 = sadd.s32 %s735, %s736
          %s738 = smul.addr %s737, 8
          %s739 = scalar_lea.vmem %s3, %s738
        $region52: #{_lambda_.1} parent=47 // pred_fallthru
          _
      $region48: #{_lambda_.1} parent=5 // pred_fallthru
        _
    $region6: #{_lambda_.1} parent=1 // loop_footer
      %s17 = sadd.s32 1, %s13
    $region7: #{_lambda_.1} parent=1 // loop_footer_branch
      %12 = sbr.rel target = $region3
    $region8: #{_lambda_.1} parent=1 // loop_exit
      _
    %740 = vsyncpa [#allocation3], 1
    %s741 = scalar_lea.sflag [#allocation3], 1
    %742 = vsyncpa %s741, 1
    %743 = vsyncpa [#allocation5], 1

</llo_original>
